<compile_context>
chip_gen: v5e
topology: v5e:2x2
jax: 0.10.0
libtpu: 0.0.40
codegen_flags: <defaults>
</compile_context>

<pallas_src>
import numpy as np
import jax
import jax.numpy as jnp
from jax import lax
from jax.experimental import pallas as pl
from jax.experimental.pallas import tpu as pltpu


def _tpu_vmem_and_cores():
    """Best-effort (vmem_bytes, num_tensorcores) query with safe fallbacks."""
    vmem = 64 * 1024 * 1024          # conservative default: v7x per-TC VMEM
    cores = 1
    try:
        info = pltpu.get_tpu_info()
        v = getattr(info, "vmem_capacity_bytes", None)
        if v:
            vmem = int(v)
        for attr in ("num_cores", "core_count", "num_tensorcores", "tensorcore_count"):
            c = getattr(info, attr, None)
            if c:
                cores = int(c)
                break
    except Exception:
        pass
    if cores == 1:
        try:
            if "v7" in jax.devices()[0].device_kind.lower():
                cores = 2
        except Exception:
            pass
    return vmem, cores


def _pick_block_b(B, Cp, HW, num_tc, budget_bytes):
    """Largest batch block that divides B, fits the VMEM budget, and (only on
    multi-TensorCore chips) keeps >= 2 grid steps so both TCs get work."""
    f32 = 4
    # Weights / bias / masks have constant block indices (DMA'd once), but
    # budget 2 buffers conservatively.
    resident = (Cp * 9 * Cp + 2 * Cp + 9 * HW) * f32 * 2

    def fits(bt):
        stream = 2 * 2 * bt * Cp * HW * f32          # x + out blocks, double-buffered
        stream += 2 * bt * HW * f32                  # attention block, double-buffered
        live = 12 * Cp * HW * f32                    # im2col + x + y1 temps (one batch elem)
        return resident + stream + live <= budget_bytes

    candidates = [bt for bt in (8, 4, 2, 1) if B % bt == 0]
    min_steps = 2 if num_tc >= 2 else 1
    for bt in candidates:
        if B // bt >= min_steps and fits(bt):
            return bt
    for bt in candidates:                            # fallback (e.g. B == 1)
        if fits(bt):
            return bt
    return 1


def _border_masks(H, W):
    """(9, 1, H*W) float32: 1.0 where the shifted 3x3 tap stays in bounds."""
    HW = H * W
    masks = np.zeros((9, 1, HW), np.float32)
    for t in range(9):
        dy, dx = t // 3 - 1, t % 3 - 1
        m = np.zeros((H, W), np.float32)
        m[max(0, -dy):min(H, H - dy), max(0, -dx):min(W, W - dx)] = 1.0
        masks[t, 0] = m.reshape(HW)
    return masks


def attention_layer_light(x_nchw, w1, b1, w2, b2, gamma):
    """
    x_nchw : (B, C, H, W) float32
    w1     : (C, C, 3, 3) float32   conv1 weight (PyTorch OIHW layout)
    b1     : (C,)         float32   conv1 bias
    w2     : (C,)         float32   conv2 (1x1, C->1) weight
    b2     : ()           float32   conv2 bias
    gamma  : ()           float32
    Returns (out (B,C,H,W), attention (B,1,H,W)) -- matching the PyTorch module.
    """
    B, C, H, W = x_nchw.shape
    HW = H * W
    Cp = ((C + 7) // 8) * 8                          # pad channels to sublane multiple

    vmem_bytes, num_tc = _tpu_vmem_and_cores()
    Bt = _pick_block_b(B, Cp, HW, num_tc, int(vmem_bytes * 0.6))
    vmem_limit = min(int(vmem_bytes * 0.75), 112 * 1024 * 1024)
    assert B % Bt == 0

    # ---- Layout prep (cheap XLA ops; x only reshapes, no HBM transpose) ----
    x_flat = x_nchw.reshape(B, C, HW)
    w1_t = jnp.transpose(w1, (0, 2, 3, 1)).reshape(C, 9, C)     # [cout, tap, cin]
    b1_c, w2_c = b1, w2
    if Cp != C:
        x_flat = jnp.pad(x_flat, ((0, 0), (0, Cp - C), (0, 0)))
        w1_t = jnp.pad(w1_t, ((0, Cp - C), (0, 0), (0, Cp - C)))
        b1_c = jnp.pad(b1, (0, Cp - C))
        w2_c = jnp.pad(w2, (0, Cp - C))
    w1_flat = w1_t.reshape(Cp, 9 * Cp)                          # single-matmul weight
    b1_col = b1_c.reshape(Cp, 1)
    w2_col = w2_c.reshape(Cp, 1)
    masks = jnp.asarray(_border_masks(H, W))                    # (9, 1, HW)
    scal = jnp.stack([jnp.asarray(b2, jnp.float32).reshape(()),
                      jnp.asarray(gamma, jnp.float32).reshape(())])   # [b2, gamma] -> SMEM

    def kernel(scal_ref, x_ref, w1_ref, b1_ref, w2_ref, mask_ref, out_ref, att_ref):
        b2_s = scal_ref[0]
        gamma_s = scal_ref[1]
        # Hoist constant-index weight / mask loads out of the batch loop.
        w1_v = w1_ref[...]                                      # (Cp, 9*Cp)
        b1_v = b1_ref[...]                                      # (Cp, 1)
        w2_v = w2_ref[...]                                      # (Cp, 1)
        mask_v = [None if t == 4 else mask_ref[t] for t in range(9)]   # (1, HW) each

        def body(b, carry):
            x = x_ref[b]                                        # (Cp, HW) lane-dense
            # conv1 (3x3, pad=1): in-kernel im2col via XLU lane rolls + border
            # masks, then ONE (Cp, 9*Cp) @ (9*Cp, HW) MXU matmul.
            taps = []
            for t in range(9):
                dy, dx = t // 3 - 1, t % 3 - 1
                shift = (-(dy * W + dx)) % HW
                tap = x if shift == 0 else pltpu.roll(x, shift, axis=1)
                if t != 4:                                      # center mask is all ones
                    tap = tap * mask_v[t]
                taps.append(tap)
            im2col = jnp.concatenate(taps, axis=0)              # (9*Cp, HW)
            y1 = jnp.dot(w1_v, im2col, preferred_element_type=jnp.float32) + b1_v
            t1 = jnp.tanh(y1)
            # conv2 (1x1, C->1): VPU multiply + sublane reduce, result lane-dense.
            logits = jnp.sum(t1 * w2_v, axis=0, keepdims=True) + b2_s     # (1, HW)
            # softmax over H*W along the lane axis.
            m = jnp.max(logits, axis=-1, keepdims=True)
            p = jnp.exp(logits - m)
            s = jnp.sum(p, axis=-1, keepdims=True)
            att = p * pl.reciprocal(s, approx=True)             # (1, HW)
            # fused gated residual: out = x * (gamma*att + 1)
            out_ref[b] = x * (gamma_s * att + 1.0)
            att_ref[b] = att
            return carry

        if Bt == 1:
            body(0, 0)
        else:
            # fori_loop keeps live ranges bounded vs. a static Python unroll.
            lax.fori_loop(0, Bt, body, 0, unroll=True)

    out_flat, att_flat = pl.pallas_call(
        kernel,
        out_shape=(
            jax.ShapeDtypeStruct((B, Cp, HW), jnp.float32),
            jax.ShapeDtypeStruct((B, 1, HW), jnp.float32),
        ),
        grid_spec=pltpu.PrefetchScalarGridSpec(
            num_scalar_prefetch=0,
            grid=(B // Bt,),
            in_specs=[
                pl.BlockSpec(memory_space=pltpu.MemorySpace.SMEM),       # [b2, gamma]
                pl.BlockSpec((Bt, Cp, HW), lambda i: (i, 0, 0)),         # x blocks
                pl.BlockSpec((Cp, 9 * Cp), lambda i: (0, 0)),            # conv1 weight (flat)
                pl.BlockSpec((Cp, 1), lambda i: (0, 0)),                 # conv1 bias
                pl.BlockSpec((Cp, 1), lambda i: (0, 0)),                 # conv2 weight
                pl.BlockSpec((9, 1, HW), lambda i: (0, 0, 0)),           # border masks
            ],
            out_specs=[
                pl.BlockSpec((Bt, Cp, HW), lambda i: (i, 0, 0)),         # out
                pl.BlockSpec((Bt, 1, HW), lambda i: (i, 0, 0)),          # attention
            ],
        ),
        compiler_params=pltpu.CompilerParams(
            dimension_semantics=("parallel",),
            vmem_limit_bytes=vmem_limit,
        ),
    )(scal, x_flat, w1_flat, b1_col, w2_col, masks)

    # TODO(synk): for very large H*W add a lane (HW) grid axis with an online
    # softmax (running max/sum scratch on an 'arbitrary' axis) plus halo columns
    # for the rolled taps, generate border masks in-kernel from broadcasted_iota,
    # and optionally cast the im2col/weights to bf16 for the conv1 matmul.
    if Cp != C:
        out_flat = out_flat[:, :C]
    out = out_flat.reshape(B, C, H, W)
    attention = att_flat.reshape(B, 1, H, W)
    return out, attention


# ----------------------------------------------------------------------------
# Pure-JAX reference (mirrors the PyTorch forward) for a correctness check.
# ----------------------------------------------------------------------------
def _reference(x_nchw, w1, b1, w2, b2, gamma):
    B, C, H, W = x_nchw.shape
    y = lax.conv_general_dilated(
        x_nchw, w1, (1, 1), ((1, 1), (1, 1)),
        dimension_numbers=("NCHW", "OIHW", "NCHW")) + b1[None, :, None, None]
    t = jnp.tanh(y)
    c = jnp.einsum('bchw,c->bhw', t, w2) + b2
    att = jax.nn.softmax(c.reshape(B, -1), axis=-1).reshape(B, 1, H, W)
    out = gamma * (x_nchw * att) + x_nchw
    return out, att


if __name__ == "__main__":
    B, C, H, W = 2, 4, 16, 16

    key = jax.random.PRNGKey(0)
    kx, kw1, kb1, kw2, kb2 = jax.random.split(key, 5)

    x = jax.random.normal(kx, (B, C, H, W), dtype=jnp.float32)
    # Deterministic parameter init (shapes follow the module's __init__).
    w1 = 0.1 * jax.random.normal(kw1, (C, C, 3, 3), dtype=jnp.float32)
    b1 = 0.1 * jax.random.normal(kb1, (C,), dtype=jnp.float32)
    w2 = 0.1 * jax.random.normal(kw2, (C,), dtype=jnp.float32)
    b2 = 0.1 * jax.random.normal(kb2, (), dtype=jnp.float32)
    # PyTorch initializes gamma to zeros(1); use a nonzero deterministic value
    # so the fused gated-residual path is actually exercised.
    gamma = jnp.float32(0.5)

    out, att = jax.jit(attention_layer_light)(x, w1, b1, w2, b2, gamma)
    out = jax.block_until_ready(out)
    att = jax.block_until_ready(att)

    out_ref, att_ref = _reference(x, w1, b1, w2, b2, gamma)

    assert out.shape == (B, C, H, W) and att.shape == (B, 1, H, W)
    assert jnp.allclose(att, att_ref, atol=1e-4, rtol=1e-3), \
        float(jnp.max(jnp.abs(att - att_ref)))
    assert jnp.allclose(out, out_ref, atol=1e-3, rtol=1e-3), \
        float(jnp.max(jnp.abs(out - out_ref)))

    print("KERNEL_OK")
</pallas_src>

<mosaic_0001>
module attributes {stable_mosaic.version = 11 : i64} {
  func.func @kernel(%arg0: i32, %arg1: memref<2xf32, #tpu.memory_space<smem>>, %arg2: memref<2x8x256xf32, #tpu.memory_space<vmem>>, %arg3: memref<8x72xf32, #tpu.memory_space<vmem>>, %arg4: memref<8x1xf32, #tpu.memory_space<vmem>>, %arg5: memref<8x1xf32, #tpu.memory_space<vmem>>, %arg6: memref<9x1x256xf32, #tpu.memory_space<vmem>>, %arg7: memref<2x8x256xf32, #tpu.memory_space<vmem>>, %arg8: memref<2x1x256xf32, #tpu.memory_space<vmem>>) attributes {dimension_semantics = [#tpu.dimension_semantics<parallel>], iteration_bounds = array<i64: 1>, scalar_prefetch = 0 : i64, scratch_operands = 0 : i64, tpu.core_type = #tpu.core_type<tc>, window_params = [{transform_indices = @transform_0, window_bounds = array<i64: 2>}, {transform_indices = @transform_1, window_bounds = array<i64: 2, 8, 256>}, {pipeline_mode = #tpu.pipeline_mode<synchronous>, transform_indices = @transform_2, window_bounds = array<i64: 8, 72>}, {pipeline_mode = #tpu.pipeline_mode<synchronous>, transform_indices = @transform_3, window_bounds = array<i64: 8, 1>}, {pipeline_mode = #tpu.pipeline_mode<synchronous>, transform_indices = @transform_4, window_bounds = array<i64: 8, 1>}, {pipeline_mode = #tpu.pipeline_mode<synchronous>, transform_indices = @transform_5, window_bounds = array<i64: 9, 1, 256>}, {transform_indices = @transform_6, window_bounds = array<i64: 2, 8, 256>}, {transform_indices = @transform_7, window_bounds = array<i64: 2, 1, 256>}]} {
    %c0 = arith.constant 0 : index
    %0 = memref.load %arg1[%c0] : memref<2xf32, #tpu.memory_space<smem>>
    %c1 = arith.constant 1 : index
    %1 = memref.load %arg1[%c1] : memref<2xf32, #tpu.memory_space<smem>>
    %c0_0 = arith.constant 0 : index
    %c0_1 = arith.constant 0 : index
    %2 = vector.load %arg3[%c0_0, %c0_1] : memref<8x72xf32, #tpu.memory_space<vmem>>, vector<8x72xf32>
    %c0_2 = arith.constant 0 : index
    %c0_3 = arith.constant 0 : index
    %3 = vector.load %arg4[%c0_2, %c0_3] : memref<8x1xf32, #tpu.memory_space<vmem>>, vector<8x1xf32>
    %c0_4 = arith.constant 0 : index
    %c0_5 = arith.constant 0 : index
    %4 = vector.load %arg5[%c0_4, %c0_5] : memref<8x1xf32, #tpu.memory_space<vmem>>, vector<8x1xf32>
    %c0_6 = arith.constant 0 : index
    %c0_7 = arith.constant 0 : index
    %c0_8 = arith.constant 0 : index
    %5 = vector.load %arg6[%c0_6, %c0_7, %c0_8] : memref<9x1x256xf32, #tpu.memory_space<vmem>>, vector<1x1x256xf32>
    %6 = vector.shape_cast %5 : vector<1x1x256xf32> to vector<1x256xf32>
    %c1_9 = arith.constant 1 : index
    %c0_10 = arith.constant 0 : index
    %c0_11 = arith.constant 0 : index
    %7 = vector.load %arg6[%c1_9, %c0_10, %c0_11] : memref<9x1x256xf32, #tpu.memory_space<vmem>>, vector<1x1x256xf32>
    %8 = vector.shape_cast %7 : vector<1x1x256xf32> to vector<1x256xf32>
    %c2 = arith.constant 2 : index
    %c0_12 = arith.constant 0 : index
    %c0_13 = arith.constant 0 : index
    %9 = vector.load %arg6[%c2, %c0_12, %c0_13] : memref<9x1x256xf32, #tpu.memory_space<vmem>>, vector<1x1x256xf32>
    %10 = vector.shape_cast %9 : vector<1x1x256xf32> to vector<1x256xf32>
    %c3 = arith.constant 3 : index
    %c0_14 = arith.constant 0 : index
    %c0_15 = arith.constant 0 : index
    %11 = vector.load %arg6[%c3, %c0_14, %c0_15] : memref<9x1x256xf32, #tpu.memory_space<vmem>>, vector<1x1x256xf32>
    %12 = vector.shape_cast %11 : vector<1x1x256xf32> to vector<1x256xf32>
    %c5 = arith.constant 5 : index
    %c0_16 = arith.constant 0 : index
    %c0_17 = arith.constant 0 : index
    %13 = vector.load %arg6[%c5, %c0_16, %c0_17] : memref<9x1x256xf32, #tpu.memory_space<vmem>>, vector<1x1x256xf32>
    %14 = vector.shape_cast %13 : vector<1x1x256xf32> to vector<1x256xf32>
    %c6 = arith.constant 6 : index
    %c0_18 = arith.constant 0 : index
    %c0_19 = arith.constant 0 : index
    %15 = vector.load %arg6[%c6, %c0_18, %c0_19] : memref<9x1x256xf32, #tpu.memory_space<vmem>>, vector<1x1x256xf32>
    %16 = vector.shape_cast %15 : vector<1x1x256xf32> to vector<1x256xf32>
    %c7 = arith.constant 7 : index
    %c0_20 = arith.constant 0 : index
    %c0_21 = arith.constant 0 : index
    %17 = vector.load %arg6[%c7, %c0_20, %c0_21] : memref<9x1x256xf32, #tpu.memory_space<vmem>>, vector<1x1x256xf32>
    %18 = vector.shape_cast %17 : vector<1x1x256xf32> to vector<1x256xf32>
    %c8 = arith.constant 8 : index
    %c0_22 = arith.constant 0 : index
    %c0_23 = arith.constant 0 : index
    %19 = vector.load %arg6[%c8, %c0_22, %c0_23] : memref<9x1x256xf32, #tpu.memory_space<vmem>>, vector<1x1x256xf32>
    %20 = vector.shape_cast %19 : vector<1x1x256xf32> to vector<1x256xf32>
    %c0_i32 = arith.constant 0 : i32
    %21 = arith.index_cast %c0_i32 : i32 to index
    %c0_24 = arith.constant 0 : index
    %c0_25 = arith.constant 0 : index
    %22 = vector.load %arg2[%21, %c0_24, %c0_25] : memref<2x8x256xf32, #tpu.memory_space<vmem>>, vector<1x8x256xf32>
    %23 = vector.shape_cast %22 : vector<1x8x256xf32> to vector<8x256xf32>
    %c17_i32 = arith.constant 17 : i32
    %24 = tpu.dynamic_rotate %23 by %c17_i32 dim 1 : vector<8x256xf32>, i32 -> vector<8x256xf32>
    %25 = vector.broadcast %6 : vector<1x256xf32> to vector<8x256xf32>
    %26 = arith.mulf %24, %25 : vector<8x256xf32>
    %c16_i32 = arith.constant 16 : i32
    %27 = tpu.dynamic_rotate %23 by %c16_i32 dim 1 : vector<8x256xf32>, i32 -> vector<8x256xf32>
    %28 = vector.broadcast %8 : vector<1x256xf32> to vector<8x256xf32>
    %29 = arith.mulf %27, %28 : vector<8x256xf32>
    %c15_i32 = arith.constant 15 : i32
    %30 = tpu.dynamic_rotate %23 by %c15_i32 dim 1 : vector<8x256xf32>, i32 -> vector<8x256xf32>
    %31 = vector.broadcast %10 : vector<1x256xf32> to vector<8x256xf32>
    %32 = arith.mulf %30, %31 : vector<8x256xf32>
    %c1_i32 = arith.constant 1 : i32
    %33 = tpu.dynamic_rotate %23 by %c1_i32 dim 1 : vector<8x256xf32>, i32 -> vector<8x256xf32>
    %34 = vector.broadcast %12 : vector<1x256xf32> to vector<8x256xf32>
    %35 = arith.mulf %33, %34 : vector<8x256xf32>
    %c255_i32 = arith.constant 255 : i32
    %36 = tpu.dynamic_rotate %23 by %c255_i32 dim 1 : vector<8x256xf32>, i32 -> vector<8x256xf32>
    %37 = vector.broadcast %14 : vector<1x256xf32> to vector<8x256xf32>
    %38 = arith.mulf %36, %37 : vector<8x256xf32>
    %c241_i32 = arith.constant 241 : i32
    %39 = tpu.dynamic_rotate %23 by %c241_i32 dim 1 : vector<8x256xf32>, i32 -> vector<8x256xf32>
    %40 = vector.broadcast %16 : vector<1x256xf32> to vector<8x256xf32>
    %41 = arith.mulf %39, %40 : vector<8x256xf32>
    %c240_i32 = arith.constant 240 : i32
    %42 = tpu.dynamic_rotate %23 by %c240_i32 dim 1 : vector<8x256xf32>, i32 -> vector<8x256xf32>
    %43 = vector.broadcast %18 : vector<1x256xf32> to vector<8x256xf32>
    %44 = arith.mulf %42, %43 : vector<8x256xf32>
    %c239_i32 = arith.constant 239 : i32
    %45 = tpu.dynamic_rotate %23 by %c239_i32 dim 1 : vector<8x256xf32>, i32 -> vector<8x256xf32>
    %46 = vector.broadcast %20 : vector<1x256xf32> to vector<8x256xf32>
    %47 = arith.mulf %45, %46 : vector<8x256xf32>
    %48 = tpu.concatenate %26, %29, %32, %35, %23, %38, %41, %44, %47 in 0 : vector<8x256xf32>, vector<8x256xf32>, vector<8x256xf32>, vector<8x256xf32>, vector<8x256xf32>, vector<8x256xf32>, vector<8x256xf32>, vector<8x256xf32>, vector<8x256xf32> -> vector<72x256xf32>
    %cst = arith.constant dense<0.000000e+00> : vector<8x256xf32>
    %49 = tpu.matmul %2, %48, %cst {dimension_numbers = #tpu.dot_dimension_numbers<[1], [0], [0], [1], [0, 0, 1, 1], [], []>} : vector<8x72xf32>, vector<72x256xf32>, vector<8x256xf32> -> vector<8x256xf32>
    %50 = vector.broadcast %3 : vector<8x1xf32> to vector<8x256xf32>
    %51 = arith.addf %49, %50 : vector<8x256xf32>
    %52 = math.tanh %51 : vector<8x256xf32>
    %53 = vector.broadcast %4 : vector<8x1xf32> to vector<8x256xf32>
    %54 = arith.mulf %52, %53 : vector<8x256xf32>
    %cst_26 = arith.constant dense<0.000000e+00> : vector<256xf32>
    %55 = vector.multi_reduction <add>, %54, %cst_26 [0] : vector<8x256xf32> to vector<256xf32>
    %56 = vector.shape_cast %55 : vector<256xf32> to vector<1x256xf32>
    %57 = vector.broadcast %0 : f32 to vector<1x256xf32>
    %58 = arith.addf %56, %57 : vector<1x256xf32>
    %cst_27 = arith.constant dense<0xFF800000> : vector<1xf32>
    %59 = vector.multi_reduction <maximumf>, %58, %cst_27 [1] : vector<1x256xf32> to vector<1xf32>
    %60 = vector.shape_cast %59 : vector<1xf32> to vector<1x1xf32>
    %61 = vector.broadcast %60 : vector<1x1xf32> to vector<1x256xf32>
    %62 = arith.subf %58, %61 : vector<1x256xf32>
    %63 = math.exp %62 : vector<1x256xf32>
    %cst_28 = arith.constant dense<0.000000e+00> : vector<1xf32>
    %64 = vector.multi_reduction <add>, %63, %cst_28 [1] : vector<1x256xf32> to vector<1xf32>
    %65 = vector.shape_cast %64 : vector<1xf32> to vector<1x1xf32>
    %66 = tpu.reciprocal %65 {approx = true} : vector<1x1xf32> -> vector<1x1xf32>
    %67 = vector.broadcast %66 : vector<1x1xf32> to vector<1x256xf32>
    %68 = arith.mulf %63, %67 : vector<1x256xf32>
    %69 = vector.broadcast %1 : f32 to vector<1x256xf32>
    %70 = arith.mulf %69, %68 : vector<1x256xf32>
    %cst_29 = arith.constant 1.000000e+00 : f32
    %71 = vector.broadcast %cst_29 : f32 to vector<1x256xf32>
    %72 = arith.addf %70, %71 : vector<1x256xf32>
    %73 = vector.broadcast %72 : vector<1x256xf32> to vector<8x256xf32>
    %74 = arith.mulf %23, %73 : vector<8x256xf32>
    %75 = arith.index_cast %c0_i32 : i32 to index
    %c0_30 = arith.constant 0 : index
    %c0_31 = arith.constant 0 : index
    %76 = vector.load %arg7[%75, %c0_30, %c0_31] : memref<2x8x256xf32, #tpu.memory_space<vmem>>, vector<1x8x256xf32>
    %77 = vector.shape_cast %76 : vector<1x8x256xf32> to vector<8x256xf32>
    %78 = vector.shape_cast %74 : vector<8x256xf32> to vector<1x8x256xf32>
    tpu.vector_store %arg7[%75, %c0_30, %c0_31], %78 {strides = array<i32>} : memref<2x8x256xf32, #tpu.memory_space<vmem>>, vector<1x8x256xf32>,
    %79 = arith.index_cast %c0_i32 : i32 to index
    %c0_32 = arith.constant 0 : index
    %c0_33 = arith.constant 0 : index
    %80 = vector.load %arg8[%79, %c0_32, %c0_33] : memref<2x1x256xf32, #tpu.memory_space<vmem>>, vector<1x1x256xf32>
    %81 = vector.shape_cast %80 : vector<1x1x256xf32> to vector<1x256xf32>
    %82 = vector.shape_cast %68 : vector<1x256xf32> to vector<1x1x256xf32>
    tpu.vector_store %arg8[%79, %c0_32, %c0_33], %82 {strides = array<i32>} : memref<2x1x256xf32, #tpu.memory_space<vmem>>, vector<1x1x256xf32>,
    %c1_i32_34 = arith.constant 1 : i32
    %83 = arith.index_cast %c1_i32_34 : i32 to index
    %c0_35 = arith.constant 0 : index
    %c0_36 = arith.constant 0 : index
    %84 = vector.load %arg2[%83, %c0_35, %c0_36] : memref<2x8x256xf32, #tpu.memory_space<vmem>>, vector<1x8x256xf32>
    %85 = vector.shape_cast %84 : vector<1x8x256xf32> to vector<8x256xf32>
    %c17_i32_37 = arith.constant 17 : i32
    %86 = tpu.dynamic_rotate %85 by %c17_i32_37 dim 1 : vector<8x256xf32>, i32 -> vector<8x256xf32>
    %87 = vector.broadcast %6 : vector<1x256xf32> to vector<8x256xf32>
    %88 = arith.mulf %86, %87 : vector<8x256xf32>
    %c16_i32_38 = arith.constant 16 : i32
    %89 = tpu.dynamic_rotate %85 by %c16_i32_38 dim 1 : vector<8x256xf32>, i32 -> vector<8x256xf32>
    %90 = vector.broadcast %8 : vector<1x256xf32> to vector<8x256xf32>
    %91 = arith.mulf %89, %90 : vector<8x256xf32>
    %c15_i32_39 = arith.constant 15 : i32
    %92 = tpu.dynamic_rotate %85 by %c15_i32_39 dim 1 : vector<8x256xf32>, i32 -> vector<8x256xf32>
    %93 = vector.broadcast %10 : vector<1x256xf32> to vector<8x256xf32>
    %94 = arith.mulf %92, %93 : vector<8x256xf32>
    %c1_i32_40 = arith.constant 1 : i32
    %95 = tpu.dynamic_rotate %85 by %c1_i32_40 dim 1 : vector<8x256xf32>, i32 -> vector<8x256xf32>
    %96 = vector.broadcast %12 : vector<1x256xf32> to vector<8x256xf32>
    %97 = arith.mulf %95, %96 : vector<8x256xf32>
    %c255_i32_41 = arith.constant 255 : i32
    %98 = tpu.dynamic_rotate %85 by %c255_i32_41 dim 1 : vector<8x256xf32>, i32 -> vector<8x256xf32>
    %99 = vector.broadcast %14 : vector<1x256xf32> to vector<8x256xf32>
    %100 = arith.mulf %98, %99 : vector<8x256xf32>
    %c241_i32_42 = arith.constant 241 : i32
    %101 = tpu.dynamic_rotate %85 by %c241_i32_42 dim 1 : vector<8x256xf32>, i32 -> vector<8x256xf32>
    %102 = vector.broadcast %16 : vector<1x256xf32> to vector<8x256xf32>
    %103 = arith.mulf %101, %102 : vector<8x256xf32>
    %c240_i32_43 = arith.constant 240 : i32
    %104 = tpu.dynamic_rotate %85 by %c240_i32_43 dim 1 : vector<8x256xf32>, i32 -> vector<8x256xf32>
    %105 = vector.broadcast %18 : vector<1x256xf32> to vector<8x256xf32>
    %106 = arith.mulf %104, %105 : vector<8x256xf32>
    %c239_i32_44 = arith.constant 239 : i32
    %107 = tpu.dynamic_rotate %85 by %c239_i32_44 dim 1 : vector<8x256xf32>, i32 -> vector<8x256xf32>
    %108 = vector.broadcast %20 : vector<1x256xf32> to vector<8x256xf32>
    %109 = arith.mulf %107, %108 : vector<8x256xf32>
    %110 = tpu.concatenate %88, %91, %94, %97, %85, %100, %103, %106, %109 in 0 : vector<8x256xf32>, vector<8x256xf32>, vector<8x256xf32>, vector<8x256xf32>, vector<8x256xf32>, vector<8x256xf32>, vector<8x256xf32>, vector<8x256xf32>, vector<8x256xf32> -> vector<72x256xf32>
    %cst_45 = arith.constant dense<0.000000e+00> : vector<8x256xf32>
    %111 = tpu.matmul %2, %110, %cst_45 {dimension_numbers = #tpu.dot_dimension_numbers<[1], [0], [0], [1], [0, 0, 1, 1], [], []>} : vector<8x72xf32>, vector<72x256xf32>, vector<8x256xf32> -> vector<8x256xf32>
    %112 = vector.broadcast %3 : vector<8x1xf32> to vector<8x256xf32>
    %113 = arith.addf %111, %112 : vector<8x256xf32>
    %114 = math.tanh %113 : vector<8x256xf32>
    %115 = vector.broadcast %4 : vector<8x1xf32> to vector<8x256xf32>
    %116 = arith.mulf %114, %115 : vector<8x256xf32>
    %cst_46 = arith.constant dense<0.000000e+00> : vector<256xf32>
    %117 = vector.multi_reduction <add>, %116, %cst_46 [0] : vector<8x256xf32> to vector<256xf32>
    %118 = vector.shape_cast %117 : vector<256xf32> to vector<1x256xf32>
    %119 = vector.broadcast %0 : f32 to vector<1x256xf32>
    %120 = arith.addf %118, %119 : vector<1x256xf32>
    %cst_47 = arith.constant dense<0xFF800000> : vector<1xf32>
    %121 = vector.multi_reduction <maximumf>, %120, %cst_47 [1] : vector<1x256xf32> to vector<1xf32>
    %122 = vector.shape_cast %121 : vector<1xf32> to vector<1x1xf32>
    %123 = vector.broadcast %122 : vector<1x1xf32> to vector<1x256xf32>
    %124 = arith.subf %120, %123 : vector<1x256xf32>
    %125 = math.exp %124 : vector<1x256xf32>
    %cst_48 = arith.constant dense<0.000000e+00> : vector<1xf32>
    %126 = vector.multi_reduction <add>, %125, %cst_48 [1] : vector<1x256xf32> to vector<1xf32>
    %127 = vector.shape_cast %126 : vector<1xf32> to vector<1x1xf32>
    %128 = tpu.reciprocal %127 {approx = true} : vector<1x1xf32> -> vector<1x1xf32>
    %129 = vector.broadcast %128 : vector<1x1xf32> to vector<1x256xf32>
    %130 = arith.mulf %125, %129 : vector<1x256xf32>
    %131 = vector.broadcast %1 : f32 to vector<1x256xf32>
    %132 = arith.mulf %131, %130 : vector<1x256xf32>
    %cst_49 = arith.constant 1.000000e+00 : f32
    %133 = vector.broadcast %cst_49 : f32 to vector<1x256xf32>
    %134 = arith.addf %132, %133 : vector<1x256xf32>
    %135 = vector.broadcast %134 : vector<1x256xf32> to vector<8x256xf32>
    %136 = arith.mulf %85, %135 : vector<8x256xf32>
    %137 = arith.index_cast %c1_i32_34 : i32 to index
    %c0_50 = arith.constant 0 : index
    %c0_51 = arith.constant 0 : index
    %138 = vector.load %arg7[%137, %c0_50, %c0_51] : memref<2x8x256xf32, #tpu.memory_space<vmem>>, vector<1x8x256xf32>
    %139 = vector.shape_cast %138 : vector<1x8x256xf32> to vector<8x256xf32>
    %140 = vector.shape_cast %136 : vector<8x256xf32> to vector<1x8x256xf32>
    tpu.vector_store %arg7[%137, %c0_50, %c0_51], %140 {strides = array<i32>} : memref<2x8x256xf32, #tpu.memory_space<vmem>>, vector<1x8x256xf32>,
    %141 = arith.index_cast %c1_i32_34 : i32 to index
    %c0_52 = arith.constant 0 : index
    %c0_53 = arith.constant 0 : index
    %142 = vector.load %arg8[%141, %c0_52, %c0_53] : memref<2x1x256xf32, #tpu.memory_space<vmem>>, vector<1x1x256xf32>
    %143 = vector.shape_cast %142 : vector<1x1x256xf32> to vector<1x256xf32>
    %144 = vector.shape_cast %130 : vector<1x256xf32> to vector<1x1x256xf32>
    tpu.vector_store %arg8[%141, %c0_52, %c0_53], %144 {strides = array<i32>} : memref<2x1x256xf32, #tpu.memory_space<vmem>>, vector<1x1x256xf32>,
    %c2_i32 = arith.constant 2 : i32
    return
  }
  func.func @transform_0(%arg0: i32) -> i32 {
    %c0_i32 = arith.constant 0 : i32
    %c0_i32_0 = arith.constant 0 : i32
    return %c0_i32 : i32
  }
  func.func @transform_1(%arg0: i32) -> (i32, i32, i32) {
    %c0_i32 = arith.constant 0 : i32
    %c0_i32_0 = arith.constant 0 : i32
    %c0_i32_1 = arith.constant 0 : i32
    return %arg0, %c0_i32, %c0_i32_0 : i32, i32, i32
  }
  func.func @transform_2(%arg0: i32) -> (i32, i32) {
    %c0_i32 = arith.constant 0 : i32
    %c0_i32_0 = arith.constant 0 : i32
    %c0_i32_1 = arith.constant 0 : i32
    return %c0_i32, %c0_i32_0 : i32, i32
  }
  func.func @transform_3(%arg0: i32) -> (i32, i32) {
    %c0_i32 = arith.constant 0 : i32
    %c0_i32_0 = arith.constant 0 : i32
    %c0_i32_1 = arith.constant 0 : i32
    return %c0_i32, %c0_i32_0 : i32, i32
  }
  func.func @transform_4(%arg0: i32) -> (i32, i32) {
    %c0_i32 = arith.constant 0 : i32
    %c0_i32_0 = arith.constant 0 : i32
    %c0_i32_1 = arith.constant 0 : i32
    return %c0_i32, %c0_i32_0 : i32, i32
  }
  func.func @transform_5(%arg0: i32) -> (i32, i32, i32) {
    %c0_i32 = arith.constant 0 : i32
    %c0_i32_0 = arith.constant 0 : i32
    %c0_i32_1 = arith.constant 0 : i32
    %c0_i32_2 = arith.constant 0 : i32
    return %c0_i32, %c0_i32_0, %c0_i32_1 : i32, i32, i32
  }
  func.func @transform_6(%arg0: i32) -> (i32, i32, i32) {
    %c0_i32 = arith.constant 0 : i32
    %c0_i32_0 = arith.constant 0 : i32
    %c0_i32_1 = arith.constant 0 : i32
    return %arg0, %c0_i32, %c0_i32_0 : i32, i32, i32
  }
  func.func @transform_7(%arg0: i32) -> (i32, i32, i32) {
    %c0_i32 = arith.constant 0 : i32
    %c0_i32_0 = arith.constant 0 : i32
    %c0_i32_1 = arith.constant 0 : i32
    return %arg0, %c0_i32, %c0_i32_0 : i32, i32, i32
  }
}

</mosaic_0001>

<llo_original>
// kernel: attention_layer_light.1
$region0: #{attention_layer_light.1}
  #allocation0 [shape = 'u32[]', space=smem, size = 0x4, offset = 0x4, fixed_abs, tag = 'smem constant byte address 0x4 - core index']
  #allocation1 [shape = 'u32[72,128]{1,0:T(1,128)}', space=vmem, size = 0x9000, scoped, tag = 'internal scratch']
  %s0 = inlined_call_operand.vmem [shape: f32[2], index: 0, kind: input, shape index: {}]
  %s1 = inlined_call_operand.vmem [shape: f32[2,8,256], index: 1, kind: input, shape index: {}]
  %s2 = inlined_call_operand.vmem [shape: f32[8,72], index: 2, kind: input, shape index: {}]
  %s3 = inlined_call_operand.vmem [shape: f32[8,1], index: 3, kind: input, shape index: {}]
  %s4 = inlined_call_operand.vmem [shape: f32[8,1], index: 4, kind: input, shape index: {}]
  %s5 = inlined_call_operand.vmem [shape: f32[9,1,256], index: 5, kind: input, shape index: {}]
  %s6 = inlined_call_operand.vmem [shape: f32[2,8,256], index: 6, kind: output, shape index: {0}]
  %s7 = inlined_call_operand.vmem [shape: f32[2,1,256], index: 7, kind: output, shape index: {1}]
  %8 = xla_tuple %s6, %s7
  %s9 = sld [smem:[#allocation0]]
  $region46: #{attention_layer_light.1} parent=0
    _
  %s11 = ssub.s32 1, %s9
  %s12 = scalar_select 0, %s11, %s9
  $region1: #{attention_layer_light.1} parent=0
    #allocation2 [shape = 'u8[512]{0}', space=smem, size = 0x200, scoped, tag = 'input window, operand 0, single buffered']
    #allocation3 [shape = 's32[1]{0}', space=sflag, size = 0x4, scoped, tag = 'scoped memory for attention_layer_light.1']
    %13 = vsyncpa [#allocation3], 0
    // Predicated region
    $region2: #{attention_layer_light.1} parent=1 // pred_check
      _
    $region3: #{attention_layer_light.1} parent=1 // pred_check_branch
      %15 = sbr.rel (0) target = $region5
    $region4: #{attention_layer_light.1} parent=1 // pred_region
      %17 = vsyncadd [#allocation3], 0
      %s19 = sshll.u32 %s0, 4
      %s20 = int_to_ptr.vmem [resolvable:$true] %s19
      %22 = dma.vmem_to_smem %s20, 16, [#allocation2], [#allocation3]
    $region5: #{attention_layer_light.1} parent=1 // pred_fallthru
      _
    // Predicated region
    $region6: #{attention_layer_light.1} parent=1 // pred_check
      _
    $region7: #{attention_layer_light.1} parent=1 // pred_check_branch
      %24 = sbr.rel (0) target = $region9
    $region8: #{attention_layer_light.1} parent=1 // pred_region
      _
    $region9: #{attention_layer_light.1} parent=1 // pred_fallthru
      _
    // Predicated region
    $region10: #{attention_layer_light.1} parent=1 // pred_check
      _
    $region11: #{attention_layer_light.1} parent=1 // pred_check_branch
      %26 = sbr.rel (0) target = $region13
    $region12: #{attention_layer_light.1} parent=1 // pred_region
      _
    $region13: #{attention_layer_light.1} parent=1 // pred_fallthru
      _
    // Predicated region
    $region14: #{attention_layer_light.1} parent=1 // pred_check
      _
    $region15: #{attention_layer_light.1} parent=1 // pred_check_branch
      %28 = sbr.rel (0) target = $region17
    $region16: #{attention_layer_light.1} parent=1 // pred_region
      _
    $region17: #{attention_layer_light.1} parent=1 // pred_fallthru
      _
    // Predicated region
    $region18: #{attention_layer_light.1} parent=1 // pred_check
      _
    $region19: #{attention_layer_light.1} parent=1 // pred_check_branch
      %30 = sbr.rel (0) target = $region21
    $region20: #{attention_layer_light.1} parent=1 // pred_region
      _
    $region21: #{attention_layer_light.1} parent=1 // pred_fallthru
      _
    // Predicated region
    $region22: #{attention_layer_light.1} parent=1 // pred_check
      _
    $region23: #{attention_layer_light.1} parent=1 // pred_check_branch
      %32 = sbr.rel (0) target = $region25
    $region24: #{attention_layer_light.1} parent=1 // pred_region
      _
    $region25: #{attention_layer_light.1} parent=1 // pred_fallthru
      _
    // Predicated region
    $region26: #{attention_layer_light.1} parent=1 // pred_check
      _
    $region27: #{attention_layer_light.1} parent=1 // pred_check_branch
      %34 = sbr.rel (0) target = $region29
    $region28: #{attention_layer_light.1} parent=1 // pred_region
      %36 = dma.done [#allocation3], 16
    $region29: #{attention_layer_light.1} parent=1 // pred_fallthru
      _
    %37 = sfence
    %s38 = sld [smem:[#allocation2]]
    %s39 = sld [smem:[#allocation2 + $0x1]]
    %v40 = vld [vmem:[%s2] sm:$0xff]
    %v41 = vld [vmem:[%s3] sm:$0xff]
    %v42 = vld [vmem:[%s4] sm:$0xff]
    %v43 = vld [vmem:[%s5] sm:$0x3]
    %s44 = scalar_lea.vmem %s5, 2
    %v45 = vld [vmem:[%s44] sm:$0x3]
    %s46 = scalar_lea.vmem %s5, 4
    %v47 = vld [vmem:[%s46] sm:$0x3]
    %s48 = scalar_lea.vmem %s5, 6
    %v49 = vld [vmem:[%s48] sm:$0x3]
    %s50 = scalar_lea.vmem %s5, 10
    %v51 = vld [vmem:[%s50] sm:$0x3]
    %s52 = scalar_lea.vmem %s5, 12
    %v53 = vld [vmem:[%s52] sm:$0x3]
    %s54 = scalar_lea.vmem %s5, 14
    %v55 = vld [vmem:[%s54] sm:$0x3]
    %s56 = scalar_lea.vmem %s5, 16
    %v57 = vld [vmem:[%s56] sm:$0x3]
    %v58 = vld [vmem:[%s1] sm:$0xff]
    %v59 = vld [vmem:[%s1 + $0x8] sm:$0xff]
    %60 = vrot.lane.b32.xlu0 %v58, 17
    %v61 = vpop.permute.xlu0 %60
    %62 = vrot.lane.b32.xlu0 %v59, 17
    %v63 = vpop.permute.xlu0 %62
    %v64 = vlaneseq
    %v65 = vand.u32 %v64, 127
    %vm66 = vcmp.lt.s32.totalorder %v65, 17
    %v67 = vsel %vm66, %v61, %v63
    %v68 = vsel %vm66, %v63, %v61
    %v70 = vperm.slane %v43, 0
    %v71 = vperm.slane %v43, 1
    %v74 = vmul.f32 %v68, %v70
    %v75 = vmul.f32 %v67, %v71
    %76 = vrot.lane.b32.xlu0 %v58, 16
    %v77 = vpop.permute.xlu0 %76
    %78 = vrot.lane.b32.xlu0 %v59, 16
    %v79 = vpop.permute.xlu0 %78
    %vm80 = vcmp.lt.s32.totalorder %v65, 16
    %v81 = vsel %vm80, %v77, %v79
    %v82 = vsel %vm80, %v79, %v77
    %v84 = vperm.slane %v45, 0
    %v85 = vperm.slane %v45, 1
    %v88 = vmul.f32 %v82, %v84
    %v89 = vmul.f32 %v81, %v85
    %90 = vrot.lane.b32.xlu0 %v58, 15
    %v91 = vpop.permute.xlu0 %90
    %92 = vrot.lane.b32.xlu0 %v59, 15
    %v93 = vpop.permute.xlu0 %92
    %vm94 = vcmp.lt.s32.totalorder %v65, 15
    %v95 = vsel %vm94, %v91, %v93
    %v96 = vsel %vm94, %v93, %v91
    %v98 = vperm.slane %v47, 0
    %v99 = vperm.slane %v47, 1
    %v102 = vmul.f32 %v96, %v98
    %v103 = vmul.f32 %v95, %v99
    %104 = vrot.lane.b32.xlu0 %v58, 1
    %v105 = vpop.permute.xlu0 %104
    %106 = vrot.lane.b32.xlu0 %v59, 1
    %v107 = vpop.permute.xlu0 %106
    %vm108 = vcmp.lt.s32.totalorder %v65, 1
    %v109 = vsel %vm108, %v105, %v107
    %v110 = vsel %vm108, %v107, %v105
    %v112 = vperm.slane %v49, 0
    %v113 = vperm.slane %v49, 1
    %v116 = vmul.f32 %v110, %v112
    %v117 = vmul.f32 %v109, %v113
    %118 = vrot.lane.b32.xlu0 %v58, 127
    %v119 = vpop.permute.xlu0 %118
    %120 = vrot.lane.b32.xlu0 %v59, 127
    %v121 = vpop.permute.xlu0 %120
    %vm122 = vcmp.lt.s32.totalorder %v65, 127
    %v123 = vsel %vm122, %v119, %v121
    %v124 = vsel %vm122, %v121, %v119
    %v126 = vperm.slane %v51, 0
    %v127 = vperm.slane %v51, 1
    %v130 = vmul.f32 %v123, %v126
    %v131 = vmul.f32 %v124, %v127
    %132 = vrot.lane.b32.xlu0 %v58, 113
    %v133 = vpop.permute.xlu0 %132
    %134 = vrot.lane.b32.xlu0 %v59, 113
    %v135 = vpop.permute.xlu0 %134
    %vm136 = vcmp.lt.s32.totalorder %v65, 113
    %v137 = vsel %vm136, %v133, %v135
    %v138 = vsel %vm136, %v135, %v133
    %v140 = vperm.slane %v53, 0
    %v141 = vperm.slane %v53, 1
    %v144 = vmul.f32 %v137, %v140
    %v145 = vmul.f32 %v138, %v141
    %146 = vrot.lane.b32.xlu0 %v58, 112
    %v147 = vpop.permute.xlu0 %146
    %148 = vrot.lane.b32.xlu0 %v59, 112
    %v149 = vpop.permute.xlu0 %148
    %vm150 = vcmp.lt.s32.totalorder %v65, 112
    %v151 = vsel %vm150, %v147, %v149
    %v152 = vsel %vm150, %v149, %v147
    %v154 = vperm.slane %v55, 0
    %v155 = vperm.slane %v55, 1
    %v158 = vmul.f32 %v151, %v154
    %v159 = vmul.f32 %v152, %v155
    %160 = vrot.lane.b32.xlu0 %v58, 111
    %v161 = vpop.permute.xlu0 %160
    %162 = vrot.lane.b32.xlu0 %v59, 111
    %v163 = vpop.permute.xlu0 %162
    %vm164 = vcmp.lt.s32.totalorder %v65, 111
    %v165 = vsel %vm164, %v161, %v163
    %v166 = vsel %vm164, %v163, %v161
    %v168 = vperm.slane %v57, 0
    %v169 = vperm.slane %v57, 1
    %v172 = vmul.f32 %v165, %v168
    %v173 = vmul.f32 %v166, %v169
    %175 = vset.pattern.permute.xlu0 0
    %176 = vperm.xlu0 %175, %v41
    %v177 = vpop.permute.xlu0 %176
    %vm179 = vcmask 588800
    %v181 = vsel %vm179, %v40, 0
    %183 = vmatpush.msra.mxu0 0.0
    %184 = vmatpush.msra.mxu0 0.0
    %185 = vmatpush.msra.mxu0 0.0
    %186 = vmatpush.msra.mxu0 0.0
    %187 = vmatpush.msra.mxu0 0.0
    %188 = vmatpush.msra.mxu0 0.0
    %189 = vmatpush.msra.mxu0 0.0
    %190 = vmatpush.msra.mxu0 %v172
    %191 = vmatpush.msra.mxu0 %v158
    %192 = vmatpush.msra.mxu0 %v144
    %193 = vmatpush.msra.mxu0 %v130
    %194 = vmatpush.msra.mxu0 %v58
    %195 = vmatpush.msra.mxu0 %v116
    %196 = vmatpush.msra.mxu0 %v102
    %197 = vmatpush.msra.mxu0 %v88
    %198 = vmatpush.msra.mxu0 %v74
    %199 = vmatmul.f32.gmra.mxu0 %v181
    %v200 = vpop.f32.mrf.mxu0
    %v201 = vadd.f32 %v177, %v200
    %202 = vdwg.mxu0
    %203 = vmatpush.msra.mxu0 0.0
    %204 = vmatpush.msra.mxu0 0.0
    %205 = vmatpush.msra.mxu0 0.0
    %206 = vmatpush.msra.mxu0 0.0
    %207 = vmatpush.msra.mxu0 0.0
    %208 = vmatpush.msra.mxu0 0.0
    %209 = vmatpush.msra.mxu0 0.0
    %210 = vmatpush.msra.mxu0 %v173
    %211 = vmatpush.msra.mxu0 %v159
    %212 = vmatpush.msra.mxu0 %v145
    %213 = vmatpush.msra.mxu0 %v131
    %214 = vmatpush.msra.mxu0 %v59
    %215 = vmatpush.msra.mxu0 %v117
    %216 = vmatpush.msra.mxu0 %v103
    %217 = vmatpush.msra.mxu0 %v89
    %218 = vmatpush.msra.mxu0 %v75
    %219 = vmatmul.f32.gmra.mxu0 %v181
    %v220 = vpop.f32.mrf.mxu0
    %v221 = vadd.f32 %v177, %v220
    %222 = vdwg.mxu0
    %v223 = vtanh.pop %v201
    %v224 = vtanh.pop %v221
    %226 = vset.pattern.permute.xlu0 0
    %227 = vperm.xlu0 %226, %v42
    %v228 = vpop.permute.xlu0 %227
    %v230 = vmul.f32 %v223, %v228
    %v231 = vmul.f32 %v224, %v228
    %v232 = vrot.slane %v230, 4
    %v233 = vadd.f32 %v230, %v232
    %v234 = vrot.slane %v233, 2
    %v235 = vadd.f32 %v233, %v234
    %v236 = vrot.slane %v235, 1
    %v237 = vadd.f32 %v235, %v236
    %v238 = vrot.slane %v231, 4
    %v239 = vadd.f32 %v231, %v238
    %v240 = vrot.slane %v239, 2
    %v241 = vadd.f32 %v239, %v240
    %v242 = vrot.slane %v241, 1
    %v243 = vadd.f32 %v241, %v242
    %v244 = vstv %s38
    %v245 = vadd.f32 %v237, %v244
    %v246 = vadd.f32 %v243, %v244
    %v247 = vmax.f32 %v245, %v246
    %248 = vmax.xlane.f32.xlu0 %v247
    %v249 = vpop.xlane.xlu0 %248
    %v250 = vsub.f32 %v245, %v249
    %v251 = vsub.f32 %v246, %v249
    %v252 = vmul.f32 %v250, 1.442695
    %v253 = vpow.pop %v252
    %v254 = vmul.f32 %v251, 1.442695
    %v255 = vpow.pop %v254
    %v256 = vadd.f32 %v253, %v255
    %257 = vadd.xlane.f32.xlu0 %v256
    %v258 = vpop.xlane.xlu0 %257
    %v259 = vrcp.pop %v258
    %v260 = vmul.f32 %v253, %v259
    %v261 = vmul.f32 %v255, %v259
    %v262 = vstv %s39
    %v263 = vmul.f32 %v262, %v260
    %v264 = vmul.f32 %v262, %v261
    %v265 = vadd.f32 %v263, 1.0
    %v266 = vadd.f32 %v264, 1.0
    %v267 = vmul.f32 %v58, %v265
    %v268 = vmul.f32 %v59, %v266
    %269 = vst [vmem:[%s6] sm:$0xff] %v267
    %270 = vst [vmem:[%s6 + $0x8] sm:$0xff] %v268
    %v273 = vrot.slane %v261, 7
    %vm274 = vcmask 1040384
    %v275 = vsel %vm274, %v260, %v273
    %v277 = vlaneseq
    %vm278 = vcmp.ge.s32.totalorder %v277, 0
    %vm279 = vcmp.lt.s32.totalorder %v277, 256
    %vm280 = vmand %vm278, %vm279
    %281 = vst.msk [vmem:[%s7] sm:$0x3] %vm280, %v275
    %s282 = scalar_lea.vmem %s1, 16
    %v283 = vld [vmem:[%s282] sm:$0xff]
    %v284 = vld [vmem:[%s282 + $0x8] sm:$0xff]
    %285 = vrot.lane.b32.xlu0 %v283, 17
    %v286 = vpop.permute.xlu0 %285
    %287 = vrot.lane.b32.xlu0 %v284, 17
    %v288 = vpop.permute.xlu0 %287
    %v289 = vsel %vm66, %v286, %v288
    %v290 = vsel %vm66, %v288, %v286
    %v291 = vmul.f32 %v290, %v70
    %v292 = vmul.f32 %v289, %v71
    %293 = vrot.lane.b32.xlu0 %v283, 16
    %v294 = vpop.permute.xlu0 %293
    %295 = vrot.lane.b32.xlu0 %v284, 16
    %v296 = vpop.permute.xlu0 %295
    %v297 = vsel %vm80, %v294, %v296
    %v298 = vsel %vm80, %v296, %v294
    %v299 = vmul.f32 %v298, %v84
    %v300 = vmul.f32 %v297, %v85
    %301 = vrot.lane.b32.xlu0 %v283, 15
    %v302 = vpop.permute.xlu0 %301
    %303 = vrot.lane.b32.xlu0 %v284, 15
    %v304 = vpop.permute.xlu0 %303
    %v305 = vsel %vm94, %v302, %v304
    %v306 = vsel %vm94, %v304, %v302
    %v307 = vmul.f32 %v306, %v98
    %v308 = vmul.f32 %v305, %v99
    %309 = vrot.lane.b32.xlu0 %v283, 1
    %v310 = vpop.permute.xlu0 %309
    %311 = vrot.lane.b32.xlu0 %v284, 1
    %v312 = vpop.permute.xlu0 %311
    %v313 = vsel %vm108, %v310, %v312
    %v314 = vsel %vm108, %v312, %v310
    %v315 = vmul.f32 %v314, %v112
    %v316 = vmul.f32 %v313, %v113
    %317 = vrot.lane.b32.xlu0 %v283, 127
    %v318 = vpop.permute.xlu0 %317
    %319 = vrot.lane.b32.xlu0 %v284, 127
    %v320 = vpop.permute.xlu0 %319
    %v321 = vsel %vm122, %v318, %v320
    %v322 = vsel %vm122, %v320, %v318
    %v323 = vmul.f32 %v321, %v126
    %v324 = vmul.f32 %v322, %v127
    %325 = vrot.lane.b32.xlu0 %v283, 113
    %v326 = vpop.permute.xlu0 %325
    %327 = vrot.lane.b32.xlu0 %v284, 113
    %v328 = vpop.permute.xlu0 %327
    %v329 = vsel %vm136, %v326, %v328
    %v330 = vsel %vm136, %v328, %v326
    %v331 = vmul.f32 %v329, %v140
    %v332 = vmul.f32 %v330, %v141
    %333 = vrot.lane.b32.xlu0 %v283, 112
    %v334 = vpop.permute.xlu0 %333
    %335 = vrot.lane.b32.xlu0 %v284, 112
    %v336 = vpop.permute.xlu0 %335
    %v337 = vsel %vm150, %v334, %v336
    %v338 = vsel %vm150, %v336, %v334
    %v339 = vmul.f32 %v337, %v154
    %v340 = vmul.f32 %v338, %v155
    %341 = vrot.lane.b32.xlu0 %v283, 111
    %v342 = vpop.permute.xlu0 %341
    %343 = vrot.lane.b32.xlu0 %v284, 111
    %v344 = vpop.permute.xlu0 %343
    %v345 = vsel %vm164, %v342, %v344
    %v346 = vsel %vm164, %v344, %v342
    %v347 = vmul.f32 %v345, %v168
    %v348 = vmul.f32 %v346, %v169
    %349 = vmatpush.msra.mxu0 0.0
    %350 = vmatpush.msra.mxu0 0.0
    %351 = vmatpush.msra.mxu0 0.0
    %352 = vmatpush.msra.mxu0 0.0
    %353 = vmatpush.msra.mxu0 0.0
    %354 = vmatpush.msra.mxu0 0.0
    %355 = vmatpush.msra.mxu0 0.0
    %356 = vmatpush.msra.mxu0 %v347
    %357 = vmatpush.msra.mxu0 %v339
    %358 = vmatpush.msra.mxu0 %v331
    %359 = vmatpush.msra.mxu0 %v323
    %360 = vmatpush.msra.mxu0 %v283
    %361 = vmatpush.msra.mxu0 %v315
    %362 = vmatpush.msra.mxu0 %v307
    %363 = vmatpush.msra.mxu0 %v299
    %364 = vmatpush.msra.mxu0 %v291
    %365 = vmatmul.f32.gmra.mxu0 %v181
    %v366 = vpop.f32.mrf.mxu0
    %v367 = vadd.f32 %v177, %v366
    %368 = vdwg.mxu0
    %369 = vmatpush.msra.mxu0 0.0
    %370 = vmatpush.msra.mxu0 0.0
    %371 = vmatpush.msra.mxu0 0.0
    %372 = vmatpush.msra.mxu0 0.0
    %373 = vmatpush.msra.mxu0 0.0
    %374 = vmatpush.msra.mxu0 0.0
    %375 = vmatpush.msra.mxu0 0.0
    %376 = vmatpush.msra.mxu0 %v348
    %377 = vmatpush.msra.mxu0 %v340
    %378 = vmatpush.msra.mxu0 %v332
    %379 = vmatpush.msra.mxu0 %v324
    %380 = vmatpush.msra.mxu0 %v284
    %381 = vmatpush.msra.mxu0 %v316
    %382 = vmatpush.msra.mxu0 %v308
    %383 = vmatpush.msra.mxu0 %v300
    %384 = vmatpush.msra.mxu0 %v292
    %385 = vmatmul.f32.gmra.mxu0 %v181
    %v386 = vpop.f32.mrf.mxu0
    %v387 = vadd.f32 %v177, %v386
    %388 = vdwg.mxu0
    %v389 = vtanh.pop %v367
    %v390 = vtanh.pop %v387
    %v391 = vmul.f32 %v389, %v228
    %v392 = vmul.f32 %v390, %v228
    %v393 = vrot.slane %v391, 4
    %v394 = vadd.f32 %v391, %v393
    %v395 = vrot.slane %v394, 2
    %v396 = vadd.f32 %v394, %v395
    %v397 = vrot.slane %v396, 1
    %v398 = vadd.f32 %v396, %v397
    %v399 = vrot.slane %v392, 4
    %v400 = vadd.f32 %v392, %v399
    %v401 = vrot.slane %v400, 2
    %v402 = vadd.f32 %v400, %v401
    %v403 = vrot.slane %v402, 1
    %v404 = vadd.f32 %v402, %v403
    %v405 = vadd.f32 %v398, %v244
    %v406 = vadd.f32 %v404, %v244
    %v407 = vmax.f32 %v405, %v406
    %408 = vmax.xlane.f32.xlu0 %v407
    %v409 = vpop.xlane.xlu0 %408
    %v410 = vsub.f32 %v405, %v409
    %v411 = vsub.f32 %v406, %v409
    %v412 = vmul.f32 %v410, 1.442695
    %v413 = vpow.pop %v412
    %v414 = vmul.f32 %v411, 1.442695
    %v415 = vpow.pop %v414
    %v416 = vadd.f32 %v413, %v415
    %417 = vadd.xlane.f32.xlu0 %v416
    %v418 = vpop.xlane.xlu0 %417
    %v419 = vrcp.pop %v418
    %v420 = vmul.f32 %v413, %v419
    %v421 = vmul.f32 %v415, %v419
    %v422 = vmul.f32 %v262, %v420
    %v423 = vmul.f32 %v262, %v421
    %v424 = vadd.f32 %v422, 1.0
    %v425 = vadd.f32 %v423, 1.0
    %v426 = vmul.f32 %v283, %v424
    %v427 = vmul.f32 %v284, %v425
    %s428 = scalar_lea.vmem %s6, 16
    %429 = vst [vmem:[%s428] sm:$0xff] %v426
    %430 = vst [vmem:[%s428 + $0x8] sm:$0xff] %v427
    %v433 = vrot.slane %v421, 7
    %v434 = vsel %vm274, %v420, %v433
    %s436 = scalar_lea.vmem %s7, 2
    %437 = vst.msk [vmem:[%s436] sm:$0x3] %vm280, %v434
    // Predicated region
    $region30: #{attention_layer_light.1} parent=1 // pred_check
      _
    $region31: #{attention_layer_light.1} parent=1 // pred_check_branch
      %439 = sbr.rel (0) target = $region33
    $region32: #{attention_layer_light.1} parent=1 // pred_region
      _
    $region33: #{attention_layer_light.1} parent=1 // pred_fallthru
      _
    // Predicated region
    $region34: #{attention_layer_light.1} parent=1 // pred_check
      _
    $region35: #{attention_layer_light.1} parent=1 // pred_check_branch
      %441 = sbr.rel (0) target = $region37
    $region36: #{attention_layer_light.1} parent=1 // pred_region
      _
    $region37: #{attention_layer_light.1} parent=1 // pred_fallthru
      _
    // Predicated region
    $region38: #{attention_layer_light.1} parent=1 // pred_check
      _
    $region39: #{attention_layer_light.1} parent=1 // pred_check_branch
      %443 = sbr.rel (0) target = $region41
    $region40: #{attention_layer_light.1} parent=1 // pred_region
      _
    $region41: #{attention_layer_light.1} parent=1 // pred_fallthru
      _
    // Predicated region
    $region42: #{attention_layer_light.1} parent=1 // pred_check
      _
    $region43: #{attention_layer_light.1} parent=1 // pred_check_branch
      %445 = sbr.rel (0) target = $region45
    $region44: #{attention_layer_light.1} parent=1 // pred_region
      _
    $region45: #{attention_layer_light.1} parent=1 // pred_fallthru
      _
    %446 = vsyncpa [#allocation3], 1

</llo_original>
